<compile_context>
chip_gen: v7x
topology: tpu7x:2x2x1
jax: 0.10.0
libtpu: 0.0.40
codegen_flags: <defaults>
</compile_context>

<pallas_src>
import functools
import math

import jax
import jax.numpy as jnp
from jax.experimental import pallas as pl
from jax.experimental.pallas import tpu as pltpu


def _round_up(x, m):
    return (x + m - 1) // m * m


# -----------------------------------------------------------------------------
# Kernels
# -----------------------------------------------------------------------------
def _conv_taps_kernel(x_ref, xh_ref, w_ref, shift_ref, o_ref, xa_ref, acc_ref,
                      *, tap_offsets, negative_slope):
    """Per-tap shifted matmuls over a staged (tile + halo) slab.

    x_ref     (tm, K)       bf16  current M-tile of the flattened input slab
    xh_ref    (halo, K)     bf16  halo rows following the tile
    w_ref     (T, K, tn)    bf16  per-tap weights (BN scale folded in)
    shift_ref (1, tn)       f32   folded conv-bias + BN shift
    o_ref     (tm, tn)      bf16  output tile
    xa_ref    (tm+halo, K)  f32   staging scratch for shifted-tap reads
    acc_ref   (tm, tn)      f32   accumulator (lives in VMEM, not the vreg file)
    """
    tm = o_ref.shape[0]
    # Stage tile + halo contiguously so every tap is a constant row offset.
    xa_ref[0:tm, :] = x_ref[...].astype(jnp.float32)
    xa_ref[tm:, :] = xh_ref[...].astype(jnp.float32)

    off0 = tap_offsets[0]
    acc_ref[...] = jnp.dot(xa_ref[off0:off0 + tm, :].astype(jnp.bfloat16),
                           w_ref[0], preferred_element_type=jnp.float32)
    for t in range(1, len(tap_offsets)):          # static unroll over kh*kw taps
        off = tap_offsets[t]
        acc_ref[...] += jnp.dot(xa_ref[off:off + tm, :].astype(jnp.bfloat16),
                                w_ref[t], preferred_element_type=jnp.float32)

    y = acc_ref[...] + shift_ref[...]
    if negative_slope != 1.0:                     # skip select when no activation
        y = jnp.where(y > 0, y, negative_slope * y)
    o_ref[...] = y.astype(o_ref.dtype)


def _conv_matmul_kernel(x_ref, w_ref, shift_ref, o_ref, *, negative_slope):
    """Single-matmul path (1x1 convs and taps-folded-into-K layouts)."""
    acc = jnp.dot(x_ref[...], w_ref[0], preferred_element_type=jnp.float32)
    y = acc + shift_ref[...]
    if negative_slope != 1.0:
        y = jnp.where(y > 0, y, negative_slope * y)
    o_ref[...] = y.astype(o_ref.dtype)


def _fused_conv_matmul(x2, w_taps, shift, tap_offsets, m_pad, tm, tn, halo,
                       negative_slope):
    """x2: [rows, K] bf16 slab; w_taps: [T, K, Cp] bf16; shift: [1, Cp] f32."""
    num_taps, k_dim, cp = w_taps.shape
    multi_tap = num_taps > 1
    grid = (cp // tn, m_pad // tm)        # M innermost -> weight block resident

    in_specs = [pl.BlockSpec((tm, k_dim), lambda j, i: (i, 0))]
    inputs = [x2]
    if multi_tap:
        assert halo > 0 and tm % halo == 0, (tm, halo)
        hstep = tm // halo                # halo block-index units
        in_specs.append(
            pl.BlockSpec((halo, k_dim), lambda j, i: ((i + 1) * hstep, 0)))
        inputs.append(x2)                 # same slab, halo window after the tile
    in_specs += [
        pl.BlockSpec((num_taps, k_dim, tn), lambda j, i: (0, 0, j)),
        pl.BlockSpec((1, tn), lambda j, i: (0, j)),
    ]
    inputs += [w_taps, shift]

    if multi_tap:
        scratch = [pltpu.VMEM((tm + halo, k_dim), jnp.float32),   # staging
                   pltpu.VMEM((tm, tn), jnp.float32)]             # accumulator
        kernel = functools.partial(
            _conv_taps_kernel,
            tap_offsets=tuple(int(o) for o in tap_offsets),
            negative_slope=negative_slope)
    else:
        scratch = []
        kernel = functools.partial(_conv_matmul_kernel,
                                   negative_slope=negative_slope)

    # Explicit VMEM budget from the actual tile footprint (double-buffered bf16
    # inputs/outputs + weights + f32 scratch), with headroom.
    bytes_io = 2 * (tm + halo) * k_dim * 2          # input tile + halo (x2 buffers)
    bytes_io += 2 * tm * tn * 2                     # bf16 output (x2 buffers)
    bytes_w = 2 * (num_taps * k_dim * tn * 2 + tn * 4)
    bytes_scratch = ((tm + halo) * k_dim * 4 + tm * tn * 4) if multi_tap else 0
    vmem_limit = int(1.5 * (bytes_io + bytes_w + bytes_scratch)) + (4 << 20)
    vmem_limit = max(16 << 20, min(vmem_limit, 128 << 20))

    return pl.pallas_call(
        kernel,
        out_shape=jax.ShapeDtypeStruct((m_pad, cp), jnp.bfloat16),
        grid=grid,
        in_specs=in_specs,
        out_specs=pl.BlockSpec((tm, tn), lambda j, i: (i, j)),
        scratch_shapes=scratch,
        compiler_params=pltpu.CompilerParams(
            dimension_semantics=("parallel", "parallel"),
            vmem_limit_bytes=vmem_limit),
    )(*inputs)


# -----------------------------------------------------------------------------
# Module wrapper (plain-JAX glue only at the boundaries, fused under jit)
# -----------------------------------------------------------------------------
class ConvPallas:
    """JAX/Pallas equivalent of the PyTorch `Conv` block (Conv2d+BN+LeakyReLU)."""

    def __init__(self, in_channels, out_channels, kernel_size=1, padding=0,
                 stride=1, dilation=1, groups=1, activation=True, *, key):
        assert groups == 1, "groups > 1 not implemented"
        self.kernel_size = kernel_size
        self.padding = padding
        self.stride = stride
        self.dilation = dilation
        self.activation = activation
        kh = kw = kernel_size
        k_w, k_b, k_g, k_be, k_m, k_v = jax.random.split(key, 6)
        fan_in = in_channels * kh * kw
        bound = 1.0 / math.sqrt(fan_in)
        # deterministic synthetic parameters (PyTorch-like init ranges)
        self.weight = jax.random.uniform(k_w, (out_channels, in_channels, kh, kw),
                                         jnp.float32, -bound, bound)
        self.bias = jax.random.uniform(k_b, (out_channels,), jnp.float32,
                                       -bound, bound)
        self.bn_gamma = 1.0 + 0.1 * jax.random.normal(k_g, (out_channels,), jnp.float32)
        self.bn_beta = 0.1 * jax.random.normal(k_be, (out_channels,), jnp.float32)
        self.bn_mean = 0.1 * jax.random.normal(k_m, (out_channels,), jnp.float32)
        self.bn_var = jnp.abs(1.0 + 0.1 * jax.random.normal(k_v, (out_channels,),
                                                            jnp.float32))
        self.bn_eps = 1e-5
        # Whole forward under jit: boundary transpose/pad/cast/slice fuse into
        # single HBM passes instead of eager per-op dispatches.
        self._forward_jit = jax.jit(self._forward)

    def __call__(self, x_nchw):
        return self._forward_jit(x_nchw)

    def _forward(self, x_nchw):
        kh = kw = self.kernel_size
        st, p, d = self.stride, self.padding, self.dilation
        N, C_in, H, W = x_nchw.shape
        C_out = self.weight.shape[0]
        Ho = (H + 2 * p - d * (kh - 1) - 1) // st + 1
        Wo = (W + 2 * p - d * (kw - 1) - 1) // st + 1
        Hp, Wp = H + 2 * p, W + 2 * p

        c_in_p = _round_up(C_in, 8)          # sublane-friendly K
        cp = _round_up(C_out, 128)           # lane-dense output channels
        if cp <= 512:
            tn = cp                          # whole C_out in one j tile: no x re-read
        elif cp % 512 == 0:
            tn = 512
        elif cp % 256 == 0:
            tn = 256
        else:
            tn = 128

        # ---- fold BN (eval) into weight scale + per-channel shift ------------
        bn_scale = self.bn_gamma / jnp.sqrt(self.bn_var + self.bn_eps)
        # torch weight [C_out, C_in, kh, kw] -> per-tap [T, C_in, C_out]
        w_taps = jnp.transpose(self.weight, (2, 3, 1, 0)).reshape(kh * kw, C_in, C_out)
        w_taps = w_taps * bn_scale[None, None, :]
        w_taps = jnp.pad(w_taps, ((0, 0), (0, c_in_p - C_in), (0, cp - C_out)))
        shift = (self.bias - self.bn_mean) * bn_scale + self.bn_beta
        shift = jnp.pad(shift, (0, cp - C_out)).reshape(1, cp).astype(jnp.float32)

        # ---- NCHW -> NHWC once, pad spatially + channels ----------------------
        x = jnp.transpose(x_nchw, (0, 2, 3, 1))
        x = jnp.pad(x, ((0, 0), (p, p), (p, p), (0, c_in_p - C_in)))

        num_taps = kh * kw
        neg = 0.1 if self.activation else 1.0     # slope 1.0 == identity (skipped)

        if st == 1 and (num_taps == 1 or C_in > 16):
            # Im2col-free path: flattened padded slab, per-tap constant row shift.
            # Output is laid out over the padded (Hp, Wp) grid (junk rows for
            # h >= Ho or w >= Wo, sliced off) so every tap is a pure row offset.
            m_valid = N * Hp * Wp
            tm_target = 512 if m_valid >= 4096 else 256   # small layers: more M tiles
            if num_taps > 1:
                offs = [i * d * Wp + j * d for i in range(kh) for j in range(kw)]
                halo = _round_up(offs[-1], 16)            # ~max_off, no pow2 snap
                tm = halo * max(1, -(-tm_target // halo)) # tm % halo == 0 by construction
            else:
                offs = [0]
                halo = 0
                tm = min(tm_target, _round_up(m_valid, 16))
            m_pad = _round_up(m_valid, tm)
            x2 = x.reshape(N * Hp * Wp, c_in_p)
            x2 = jnp.pad(x2, ((0, m_pad + halo - m_valid), (0, 0))).astype(jnp.bfloat16)
            w_in = w_taps.astype(jnp.bfloat16)
            out = _fused_conv_matmul(x2, w_in, shift, offs, m_pad, tm, tn, halo, neg)
            y = out[:m_valid].reshape(N, Hp, Wp, cp)[:, :Ho, :Wo, :C_out]
        else:
            # Taps folded into K: stride > 1, or small-C_in stems where per-tap
            # K would leave the MXU systolic depth nearly idle.
            m = N * Ho * Wo
            tm_target = 512 if m >= 4096 else 256
            tm = min(tm_target, _round_up(m, 16))
            m_pad = _round_up(m, tm)
            cols = []
            for i in range(kh):
                for j in range(kw):
                    hi, wi = i * d, j * d
                    patch = x[:, hi:hi + (Ho - 1) * st + 1:st,
                                 wi:wi + (Wo - 1) * st + 1:st, :]
                    cols.append(patch.reshape(m, c_in_p))
            patches = jnp.stack(cols, axis=1).reshape(m, num_taps * c_in_p)
            patches = jnp.pad(patches, ((0, m_pad - m), (0, 0))).astype(jnp.bfloat16)
            w_in = w_taps.reshape(1, num_taps * c_in_p, cp).astype(jnp.bfloat16)
            out = _fused_conv_matmul(patches, w_in, shift, [0], m_pad, tm, tn, 0, neg)
            y = out[:m].reshape(N, Ho, Wo, cp)[..., :C_out]

        # back to NCHW / f32 at the boundary (fused with the slice under jit)
        return jnp.transpose(y, (0, 3, 1, 2)).astype(jnp.float32)


# -----------------------------------------------------------------------------
# Demo / self-check
# -----------------------------------------------------------------------------
if __name__ == "__main__":
    key = jax.random.PRNGKey(0)
    k_x1, k_x2, k_p1, k_p2, k_p3, k_p4 = jax.random.split(key, 6)

    N, H, W = 2, 16, 16
    x_small = jax.random.normal(k_x1, (N, 4, H, W), jnp.float32)
    x_wide = jax.random.normal(k_x2, (N, 32, H, W), jnp.float32)

    def reference(conv, xin):
        ref = jax.lax.conv_general_dilated(
            xin, conv.weight,
            window_strides=(conv.stride, conv.stride),
            padding=[(conv.padding, conv.padding)] * 2,
            rhs_dilation=(conv.dilation, conv.dilation),
            dimension_numbers=("NCHW", "OIHW", "NCHW"))
        ref = ref + conv.bias[None, :, None, None]
        s = conv.bn_gamma / jnp.sqrt(conv.bn_var + conv.bn_eps)
        ref = (ref - conv.bn_mean[None, :, None, None]) * s[None, :, None, None] \
            + conv.bn_beta[None, :, None, None]
        if conv.activation:
            ref = jnp.where(ref > 0, ref, 0.1 * ref)
        return ref

    def check(conv, xin):
        out = jax.block_until_ready(conv(xin))
        ref = reference(conv, xin)
        assert out.shape == ref.shape, (out.shape, ref.shape)
        err = float(jnp.max(jnp.abs(out - ref)))
        assert jnp.allclose(out, ref, atol=3e-2, rtol=3e-2), err

    # 1) module default: 1x1 conv -> single-matmul path
    check(ConvPallas(4, 8, kernel_size=1, padding=0, stride=1, dilation=1,
                     groups=1, activation=True, key=k_p1), x_small)
    # 2) 3x3, small-C_in stem -> taps folded into K (full MXU depth)
    check(ConvPallas(4, 8, kernel_size=3, padding=1, stride=1, dilation=1,
                     groups=1, activation=True, key=k_p2), x_small)
    # 3) 3x3, C_in=32 -> im2col-free per-tap shifted matmuls with halo tiles
    check(ConvPallas(32, 64, kernel_size=3, padding=1, stride=1, dilation=1,
                     groups=1, activation=True, key=k_p3), x_wide)
    # 4) 3x3 stride-2 downsample, no activation -> folded-K path, identity epilogue
    check(ConvPallas(4, 8, kernel_size=3, padding=1, stride=2, dilation=1,
                     groups=1, activation=False, key=k_p4), x_small)

    print("KERNEL_OK")
</pallas_src>

<mosaic_0001>
module attributes {stable_mosaic.version = 11 : i64} {
  func.func @_conv_matmul_kernel(%arg0: i32, %arg1: i32, %arg2: memref<256x8xbf16, #tpu.memory_space<vmem>>, %arg3: memref<1x8x128xbf16, #tpu.memory_space<vmem>>, %arg4: memref<1x128xf32, #tpu.memory_space<vmem>>, %arg5: memref<256x128xbf16, #tpu.memory_space<vmem>>) attributes {dimension_semantics = [#tpu.dimension_semantics<parallel>, #tpu.dimension_semantics<parallel>], iteration_bounds = array<i64: 1, 2>, scalar_prefetch = 0 : i64, scratch_operands = 0 : i64, tpu.core_type = #tpu.core_type<tc>, window_params = [{transform_indices = @transform_0, window_bounds = array<i64: 256, 8>}, {transform_indices = @transform_1, window_bounds = array<i64: 1, 8, 128>}, {transform_indices = @transform_2, window_bounds = array<i64: 1, 128>}, {transform_indices = @transform_3, window_bounds = array<i64: 256, 128>}]} {
    %c0 = arith.constant 0 : index
    %c0_0 = arith.constant 0 : index
    %0 = vector.load %arg2[%c0, %c0_0] : memref<256x8xbf16, #tpu.memory_space<vmem>>, vector<256x8xbf16>
    %c0_1 = arith.constant 0 : index
    %c0_2 = arith.constant 0 : index
    %c0_3 = arith.constant 0 : index
    %1 = vector.load %arg3[%c0_1, %c0_2, %c0_3] : memref<1x8x128xbf16, #tpu.memory_space<vmem>>, vector<1x8x128xbf16>
    %2 = vector.shape_cast %1 : vector<1x8x128xbf16> to vector<8x128xbf16>
    %cst = arith.constant dense<0.000000e+00> : vector<256x128xf32>
    %3 = tpu.matmul %0, %2, %cst {dimension_numbers = #tpu.dot_dimension_numbers<[1], [0], [0], [1], [0, 0, 1, 1], [], []>} : vector<256x8xbf16>, vector<8x128xbf16>, vector<256x128xf32> -> vector<256x128xf32>
    %c0_4 = arith.constant 0 : index
    %c0_5 = arith.constant 0 : index
    %4 = vector.load %arg4[%c0_4, %c0_5] : memref<1x128xf32, #tpu.memory_space<vmem>>, vector<1x128xf32>
    %5 = vector.broadcast %4 : vector<1x128xf32> to vector<256x128xf32>
    %6 = arith.addf %3, %5 : vector<256x128xf32>
    %cst_6 = arith.constant 0.000000e+00 : f32
    %7 = vector.broadcast %cst_6 : f32 to vector<256x128xf32>
    %8 = arith.cmpf ogt, %6, %7 : vector<256x128xf32>
    %cst_7 = arith.constant 1.000000e-01 : f32
    %9 = vector.broadcast %cst_7 : f32 to vector<256x128xf32>
    %10 = arith.mulf %9, %6 : vector<256x128xf32>
    %11 = arith.select %8, %6, %10 : vector<256x128xi1>, vector<256x128xf32>
    %12 = arith.truncf %11 : vector<256x128xf32> to vector<256x128xbf16>
    %c0_8 = arith.constant 0 : index
    %c0_9 = arith.constant 0 : index
    %13 = vector.load %arg5[%c0_8, %c0_9] : memref<256x128xbf16, #tpu.memory_space<vmem>>, vector<256x128xbf16>
    tpu.vector_store %arg5[%c0_8, %c0_9], %12 {strides = array<i32>} : memref<256x128xbf16, #tpu.memory_space<vmem>>, vector<256x128xbf16>,
    return
  }
  func.func @transform_0(%arg0: i32, %arg1: i32) -> (i32, i32) {
    %c0_i32 = arith.constant 0 : i32
    %c0_i32_0 = arith.constant 0 : i32
    return %arg1, %c0_i32 : i32, i32
  }
  func.func @transform_1(%arg0: i32, %arg1: i32) -> (i32, i32, i32) {
    %c0_i32 = arith.constant 0 : i32
    %c0_i32_0 = arith.constant 0 : i32
    %c0_i32_1 = arith.constant 0 : i32
    return %c0_i32, %c0_i32_0, %arg0 : i32, i32, i32
  }
  func.func @transform_2(%arg0: i32, %arg1: i32) -> (i32, i32) {
    %c0_i32 = arith.constant 0 : i32
    %c0_i32_0 = arith.constant 0 : i32
    return %c0_i32, %arg0 : i32, i32
  }
  func.func @transform_3(%arg0: i32, %arg1: i32) -> (i32, i32) {
    %c0_i32 = arith.constant 0 : i32
    return %arg1, %arg0 : i32, i32
  }
}

</mosaic_0001>

<llo_original>
// kernel: _forward.1
$region0: #{_forward.1}
  #allocation0 [shape = 'u32[]', space=smem, size = 0x4, offset = 0x4, fixed_abs, tag = 'smem constant byte address 0x4 - core index']
  #allocation1 [shape = 'u32[144,128]{1,0:T(1,128)}', space=vmem, size = 0x12000, scoped, tag = 'internal scratch']
  %s0 = inlined_call_operand.vmem [shape: bf16[512,8], index: 0, kind: input, shape index: {}]
  %s1 = inlined_call_operand.vmem [shape: bf16[1,8,128], index: 1, kind: input, shape index: {}]
  %s2 = inlined_call_operand.vmem [shape: f32[1,128], index: 2, kind: input, shape index: {}]
  %s3 = inlined_call_operand.vmem [shape: bf16[512,128], index: 3, kind: output, shape index: {}]
  %s4 = sld [smem:[#allocation0]]
  $region45: #{_forward.1} parent=0
    _
  %s6 = ssub.s32 1, %s4
  %s7 = scalar_select 0, %s6, %s4
  loop: start=0, step=1, limit=4
  $region2: #{_forward.1} parent=0 // loop_pre_header
    _
  $region3: #{_forward.1} parent=0 // loop_header
    %s9 = sphi 0, %s13
    %p10 = scmp.ge.s32.totalorder %s9, 4
    %s16 = sphi 0, %s28
    %s17 = sphi 0, %s24
    %s18 = sphi 0, %s16
    %s19 = sphi 0, %s17
    %s20 = sphi 0, %s18
    %s21 = sphi 0, %s19
    %s31 = sphi 0, %s33
    %s34 = sphi 0, %s31
    %s35 = sphi 0, %s34
    %s51 = sphi 0, %s35
    %s57 = sphi 0, %s59
    %s60 = sphi 0, %s57
    %s61 = sphi 0, %s60
    %s77 = sphi 0, %s61
    %s83 = sphi 0, %s85
    %s86 = sphi 0, %s83
    %s87 = sphi 0, %s86
    %s103 = sphi 0, %s87
    %s111 = sphi 0, %s113
    %s114 = sphi 0, %s111
    %s115 = sphi 0, %s114
    %s131 = sphi 0, %s115
  $region4: #{_forward.1} parent=0 // loop_header_branch
    %12 = sbr.rel (%p10) target = $region8
  $region5: #{_forward.1} parent=0 // loop_body
    %s14 = ssub.s32 %s9, 1
    %s15 = ssub.s32 %s9, 2
    %s22 = sadd.s32 1, %s17
    %p23 = scmp.ge.s32.totalorder %s22, 2
    %s24 = scalar_select %p23, 0, %s22
    %s25 = sadd.s32 1, %s16
    %s26 = scalar_select %p23, %s25, %s16
    %p27 = scmp.ge.s32.totalorder %s26, 1
    %s28 = scalar_select %p27, 0, %s26
    %s29 = ssub.s32 %s17, %s24
    %p30 = scmp.eq.s32.totalorder %s29, 0
    %s32 = sadd.s32 %s31, 1
    %s33 = scalar_select %p30, %s31, %s32
    %p36 = pneg %p30
    %p37 = scmp.eq.s32.totalorder %s9, 1
    %p38 = por %p36, %p37
    %p39 = scmp.ne.s32.totalorder %s31, %s34
    %p40 = scmp.eq.s32.totalorder %s9, 0
    %p41 = por %p39, %p40
    %p42 = scmp.ne.s32.totalorder %s31, %s34
    %p43 = scmp.eq.s32.totalorder %s14, 1
    %p44 = por %p42, %p43
    %p45 = scmp.ne.s32.totalorder %s34, %s35
    %p46 = scmp.eq.s32.totalorder %s14, 0
    %p47 = por %p45, %p46
    %p48 = scmp.ne.s32.totalorder %s34, %s35
    %p49 = scmp.eq.s32.totalorder %s15, 1
    %p50 = por %p48, %p49
    %p52 = scmp.ne.s32.totalorder %s35, %s51
    %p53 = scmp.eq.s32.totalorder %s15, 0
    %p54 = por %p52, %p53
    %s55 = ssub.s32 %s16, %s28
    %p56 = scmp.eq.s32.totalorder %s55, 0
    %s58 = sadd.s32 %s57, 1
    %s59 = scalar_select %p56, %s57, %s58
    %p62 = pneg %p56
    %p63 = scmp.eq.s32.totalorder %s9, 1
    %p64 = por %p62, %p63
    %p65 = scmp.ne.s32.totalorder %s57, %s60
    %p66 = scmp.eq.s32.totalorder %s9, 0
    %p67 = por %p65, %p66
    %p68 = scmp.ne.s32.totalorder %s57, %s60
    %p69 = scmp.eq.s32.totalorder %s14, 1
    %p70 = por %p68, %p69
    %p71 = scmp.ne.s32.totalorder %s60, %s61
    %p72 = scmp.eq.s32.totalorder %s14, 0
    %p73 = por %p71, %p72
    %p74 = scmp.ne.s32.totalorder %s60, %s61
    %p75 = scmp.eq.s32.totalorder %s15, 1
    %p76 = por %p74, %p75
    %p78 = scmp.ne.s32.totalorder %s61, %s77
    %p79 = scmp.eq.s32.totalorder %s15, 0
    %p80 = por %p78, %p79
    %s81 = ssub.s32 %s16, %s28
    %p82 = scmp.eq.s32.totalorder %s81, 0
    %s84 = sadd.s32 %s83, 1
    %s85 = scalar_select %p82, %s83, %s84
    %p88 = pneg %p82
    %p89 = scmp.eq.s32.totalorder %s9, 1
    %p90 = por %p88, %p89
    %p91 = scmp.ne.s32.totalorder %s83, %s86
    %p92 = scmp.eq.s32.totalorder %s9, 0
    %p93 = por %p91, %p92
    %p94 = scmp.ne.s32.totalorder %s83, %s86
    %p95 = scmp.eq.s32.totalorder %s14, 1
    %p96 = por %p94, %p95
    %p97 = scmp.ne.s32.totalorder %s86, %s87
    %p98 = scmp.eq.s32.totalorder %s14, 0
    %p99 = por %p97, %p98
    %p100 = scmp.ne.s32.totalorder %s86, %s87
    %p101 = scmp.eq.s32.totalorder %s15, 1
    %p102 = por %p100, %p101
    %p104 = scmp.ne.s32.totalorder %s87, %s103
    %p105 = scmp.eq.s32.totalorder %s15, 0
    %p106 = por %p104, %p105
    %s107 = ssub.s32 %s17, %s24
    %s108 = ssub.s32 %s16, %s28
    %s109 = sor.u32 %s107, %s108
    %p110 = scmp.eq.s32.totalorder %s109, 0
    %s112 = sadd.s32 %s111, 1
    %s113 = scalar_select %p110, %s111, %s112
    %p116 = pneg %p110
    %p117 = scmp.eq.s32.totalorder %s9, 1
    %p118 = por %p116, %p117
    %p119 = scmp.ne.s32.totalorder %s111, %s114
    %p120 = scmp.eq.s32.totalorder %s9, 0
    %p121 = por %p119, %p120
    %p122 = scmp.ne.s32.totalorder %s111, %s114
    %p123 = scmp.eq.s32.totalorder %s14, 1
    %p124 = por %p122, %p123
    %p125 = scmp.ne.s32.totalorder %s114, %s115
    %p126 = scmp.eq.s32.totalorder %s14, 0
    %p127 = por %p125, %p126
    %p128 = scmp.ne.s32.totalorder %s114, %s115
    %p129 = scmp.eq.s32.totalorder %s15, 1
    %p130 = por %p128, %p129
    %p132 = scmp.ne.s32.totalorder %s115, %s131
    %p133 = scmp.eq.s32.totalorder %s15, 0
    %p134 = por %p132, %p133
    %p135 = scmp.le.s32.totalorder 1, %s9
    %p136 = scmp.lt.s32.totalorder %s9, 3
    %p137 = pnand %p135, %p136
    %p138 = pneg %p137
    // Predicated region
    $region9: #{_forward.1} parent=5 // pred_check
      _
    $region10: #{_forward.1} parent=5 // pred_check_branch
      %140 = sbr.rel (%p137) target = $region12
    $region11: #{_forward.1} parent=5 // pred_region
      %s141 = ssub.s32 %s9, 1
      // Predicated region
      $region13: #{_forward.1} parent=11 // pred_check
        %p142 = pneg %p73
      $region14: #{_forward.1} parent=11 // pred_check_branch
        %144 = sbr.rel (%p142) target = $region16
      $region15: #{_forward.1} parent=11 // pred_region
        %p145 = scmp.lt.s32.totalorder %s18, 0
        %s146 = scalar_select %p145, %s18, 0
        %s147 = smul.addr %s146, 4
        %s148 = scalar_lea.vmem %s1, %s147
      $region16: #{_forward.1} parent=11 // pred_fallthru
        _
      // Predicated region
      $region17: #{_forward.1} parent=11 // pred_check
        %p149 = pneg %p99
      $region18: #{_forward.1} parent=11 // pred_check_branch
        %151 = sbr.rel (%p149) target = $region20
      $region19: #{_forward.1} parent=11 // pred_region
        %p152 = scmp.lt.s32.totalorder %s18, 0
        %s153 = scalar_select %p152, %s18, 0
        %s154 = scalar_lea.vmem %s2, %s153
      $region20: #{_forward.1} parent=11 // pred_fallthru
        _
    $region12: #{_forward.1} parent=5 // pred_fallthru
      _
    %p155 = scmp.lt.s32.totalorder %s9, 2
    // Predicated region
    $region21: #{_forward.1} parent=5 // pred_check
      %p156 = pneg %p155
    $region22: #{_forward.1} parent=5 // pred_check_branch
      %158 = sbr.rel (%p156) target = $region24
    $region23: #{_forward.1} parent=5 // pred_region
      // Predicated region
      $region25: #{_forward.1} parent=23 // pred_check
        %p159 = pneg %p41
      $region26: #{_forward.1} parent=23 // pred_check_branch
        %161 = sbr.rel (%p159) target = $region28
      $region27: #{_forward.1} parent=23 // pred_region
        %s162 = smul.u32 32, %s17
        %p163 = scmp.lt.s32.totalorder %s162, 63
        %s164 = scalar_select %p163, %s162, 63
        %s165 = smul.addr %s164, 4
        %s166 = scalar_lea.vmem %s0, %s165
        %s167 = smul.u32 32, %s17
      $region28: #{_forward.1} parent=23 // pred_fallthru
        _
    $region24: #{_forward.1} parent=5 // pred_fallthru
      _
    %p168 = scmp.le.s32.totalorder 1, %s9
    %p169 = scmp.lt.s32.totalorder %s9, 3
    %p170 = pnand %p168, %p169
    %p171 = pneg %p170
    // Predicated region
    $region29: #{_forward.1} parent=5 // pred_check
      _
    $region30: #{_forward.1} parent=5 // pred_check_branch
      %173 = sbr.rel (%p170) target = $region32
    $region31: #{_forward.1} parent=5 // pred_region
      %s174 = ssub.s32 %s9, 1
      %s175 = smul.u32 32, %s19
      %p176 = scmp.lt.s32.totalorder %s175, 63
      %s177 = scalar_select %p176, %s175, 63
      %s178 = smul.addr %s177, 4
      %s179 = scalar_lea.vmem %s0, %s178
      %p180 = pneg %p47
      %p181 = pneg %p44
      %p182 = scmp.lt.s32.totalorder %s18, 0
      %s183 = scalar_select %p182, %s18, 0
      %s184 = smul.addr %s183, 4
      %s185 = scalar_lea.vmem %s1, %s184
      %p186 = pneg %p73
      %p187 = pneg %p70
      %p188 = scmp.lt.s32.totalorder %s18, 0
      %s189 = scalar_select %p188, %s18, 0
      %s190 = scalar_lea.vmem %s2, %s189
      %p191 = pneg %p99
      %p192 = pneg %p96
      %p193 = pneg %p127
      %p194 = pneg %p124
      %s195 = smul.u32 32, %s19
      %p196 = scmp.lt.s32.totalorder %s195, 63
      %s197 = scalar_select %p196, %s195, 63
      %p198 = scmp.lt.s32.totalorder %s18, 0
      %s199 = scalar_select %p198, %s18, 0
      %s200 = sadd.s32 %s199, %s197
      %s201 = smul.addr %s200, 4
      %s202 = scalar_lea.vmem %s3, %s201
      %s203 = smul.u32 32, %s19
      %p204 = scmp.lt.s32.totalorder %s203, 63
      %s205 = scalar_select %p204, %s203, 63
      %s206 = smul.addr %s205, 4
      %s207 = scalar_lea.vmem %s0, %s206
      %s208 = smul.u32 32, %s19
      %p209 = scmp.lt.s32.totalorder %s18, 0
      %s210 = scalar_select %p209, %s18, 0
      %s211 = smul.addr %s210, 4
      %s212 = scalar_lea.vmem %s1, %s211
      %p213 = scmp.lt.s32.totalorder %s18, 0
      %s214 = scalar_select %p213, %s18, 0
      %s215 = scalar_lea.vmem %s2, %s214
      %s216 = smul.u32 32, %s19
      %p217 = scmp.lt.s32.totalorder %s216, 63
      %s218 = scalar_select %p217, %s216, 63
      %p219 = scmp.lt.s32.totalorder %s18, 0
      %s220 = scalar_select %p219, %s18, 0
      %s221 = sadd.s32 %s220, %s218
      %s222 = smul.addr %s221, 4
      %s223 = scalar_lea.vmem %s3, %s222
      %s224 = smul.u32 32, %s19
      %v226 = vld [vmem:[%s207] sm:$0xf]
      %v227 = vld [vmem:[%s207 + $0x4] sm:$0xf]
      %v228 = vld [vmem:[%s207 + $0x8] sm:$0xf]
      %v229 = vld [vmem:[%s207 + $0xc] sm:$0xf]
      %v230 = vld [vmem:[%s207 + $0x10] sm:$0xf]
      %v231 = vld [vmem:[%s207 + $0x14] sm:$0xf]
      %v232 = vld [vmem:[%s207 + $0x18] sm:$0xf]
      %v233 = vld [vmem:[%s207 + $0x1c] sm:$0xf]
      %v234 = vld [vmem:[%s207 + $0x20] sm:$0xf]
      %v235 = vld [vmem:[%s207 + $0x24] sm:$0xf]
      %v236 = vld [vmem:[%s207 + $0x28] sm:$0xf]
      %v237 = vld [vmem:[%s207 + $0x2c] sm:$0xf]
      %v238 = vld [vmem:[%s207 + $0x30] sm:$0xf]
      %v239 = vld [vmem:[%s207 + $0x34] sm:$0xf]
      %v240 = vld [vmem:[%s207 + $0x38] sm:$0xf]
      %v241 = vld [vmem:[%s207 + $0x3c] sm:$0xf]
      %v242 = vld [vmem:[%s207 + $0x40] sm:$0xf]
      %v243 = vld [vmem:[%s207 + $0x44] sm:$0xf]
      %v244 = vld [vmem:[%s207 + $0x48] sm:$0xf]
      %v245 = vld [vmem:[%s207 + $0x4c] sm:$0xf]
      %v246 = vld [vmem:[%s207 + $0x50] sm:$0xf]
      %v247 = vld [vmem:[%s207 + $0x54] sm:$0xf]
      %v248 = vld [vmem:[%s207 + $0x58] sm:$0xf]
      %v249 = vld [vmem:[%s207 + $0x5c] sm:$0xf]
      %v250 = vld [vmem:[%s207 + $0x60] sm:$0xf]
      %v251 = vld [vmem:[%s207 + $0x64] sm:$0xf]
      %v252 = vld [vmem:[%s207 + $0x68] sm:$0xf]
      %v253 = vld [vmem:[%s207 + $0x6c] sm:$0xf]
      %v254 = vld [vmem:[%s207 + $0x70] sm:$0xf]
      %v255 = vld [vmem:[%s207 + $0x74] sm:$0xf]
      %v256 = vld [vmem:[%s207 + $0x78] sm:$0xf]
      %v257 = vld [vmem:[%s207 + $0x7c] sm:$0xf]
      %v258 = vld [vmem:[%s212] sm:$0xf]
      %v259 = vld [vmem:[%s215] sm:$0x1]
      %v261 = vlaneseq
      %v262 = vshrl.u32 %v261, 7
      %v263 = vsub.s32 0, %v262
      %v264 = vrot.slane %v259, %v263
      %v298 = vunpack.c.l.b16 %v226
      %v299 = vunpack.c.l.b16 %v227
      %v300 = vunpack.c.l.b16 %v228
      %v301 = vunpack.c.l.b16 %v229
      %v302 = vunpack.c.l.b16 %v230
      %v303 = vunpack.c.l.b16 %v231
      %v304 = vunpack.c.l.b16 %v232
      %v305 = vunpack.c.l.b16 %v233
      %v306 = vunpack.c.l.b16 %v234
      %v307 = vunpack.c.l.b16 %v235
      %v308 = vunpack.c.l.b16 %v236
      %v309 = vunpack.c.l.b16 %v237
      %v310 = vunpack.c.l.b16 %v238
      %v311 = vunpack.c.l.b16 %v239
      %v312 = vunpack.c.l.b16 %v240
      %v313 = vunpack.c.l.b16 %v241
      %v314 = vunpack.c.l.b16 %v242
      %v315 = vunpack.c.l.b16 %v243
      %v316 = vunpack.c.l.b16 %v244
      %v317 = vunpack.c.l.b16 %v245
      %v318 = vunpack.c.l.b16 %v246
      %v319 = vunpack.c.l.b16 %v247
      %v320 = vunpack.c.l.b16 %v248
      %v321 = vunpack.c.l.b16 %v249
      %v322 = vunpack.c.l.b16 %v250
      %v323 = vunpack.c.l.b16 %v251
      %v324 = vunpack.c.l.b16 %v252
      %v325 = vunpack.c.l.b16 %v253
      %v326 = vunpack.c.l.b16 %v254
      %v327 = vunpack.c.l.b16 %v255
      %v328 = vunpack.c.l.b16 %v256
      %v329 = vunpack.c.l.b16 %v257
      %v330 = vpack.c.b16 %v299, %v298
      %v331 = vpack.c.b16 %v301, %v300
      %v332 = vpack.c.b16 %v303, %v302
      %v333 = vpack.c.b16 %v305, %v304
      %v334 = vpack.c.b16 %v307, %v306
      %v335 = vpack.c.b16 %v309, %v308
      %v336 = vpack.c.b16 %v311, %v310
      %v337 = vpack.c.b16 %v313, %v312
      %v338 = vpack.c.b16 %v315, %v314
      %v339 = vpack.c.b16 %v317, %v316
      %v340 = vpack.c.b16 %v319, %v318
      %v341 = vpack.c.b16 %v321, %v320
      %v342 = vpack.c.b16 %v323, %v322
      %v343 = vpack.c.b16 %v325, %v324
      %v344 = vpack.c.b16 %v327, %v326
      %v345 = vpack.c.b16 %v329, %v328
      %vm346 = vcmask 64512
      %v348 = vsel %vm346, %v330, 0
      %v351 = vsel %vm346, %v331, 0
      %v354 = vsel %vm346, %v332, 0
      %v357 = vsel %vm346, %v333, 0
      %v360 = vsel %vm346, %v334, 0
      %v363 = vsel %vm346, %v335, 0
      %v366 = vsel %vm346, %v336, 0
      %v369 = vsel %vm346, %v337, 0
      %v372 = vsel %vm346, %v338, 0
      %v375 = vsel %vm346, %v339, 0
      %v378 = vsel %vm346, %v340, 0
      %v381 = vsel %vm346, %v341, 0
      %v384 = vsel %vm346, %v342, 0
      %v387 = vsel %vm346, %v343, 0
      %v390 = vsel %vm346, %v344, 0
      %v393 = vsel %vm346, %v345, 0
      %vm395 = vcmask 1043456
      %v397 = vsel %vm395, %v258, 0
      %399 = vmatprep.subr.bf16.mxu0 0
      %400 = vmatpush1.bf16.msra.mxu0 %v397
      %401 = vmatprep.subr.bf16.mxu0 0
      %402 = vmatpush1.bf16.msra.mxu0 0
      %403 = vmatprep.subr.bf16.mxu0 0
      %404 = vmatpush1.bf16.msra.mxu0 0
      %405 = vmatprep.subr.bf16.mxu0 0
      %406 = vmatpush1.bf16.msra.mxu0 0
      %407 = vmatprep.subr.bf16.mxu0 0
      %408 = vmatpush1.bf16.msra.mxu0 0
      %409 = vmatprep.subr.bf16.mxu0 0
      %410 = vmatpush1.bf16.msra.mxu0 0
      %411 = vmatprep.subr.bf16.mxu0 0
      %412 = vmatpush1.bf16.msra.mxu0 0
      %413 = vmatprep.subr.bf16.mxu0 0
      %414 = vmatpush1.bf16.msra.mxu0 0
      %415 = vmatprep.subr.bf16.mxu0 0
      %416 = vmatpush1.bf16.msra.mxu0 0
      %417 = vmatprep.subr.bf16.mxu0 0
      %418 = vmatpush1.bf16.msra.mxu0 0
      %419 = vmatprep.subr.bf16.mxu0 0
      %420 = vmatpush1.bf16.msra.mxu0 0
      %421 = vmatprep.subr.bf16.mxu0 0
      %422 = vmatpush1.bf16.msra.mxu0 0
      %423 = vmatprep.subr.bf16.mxu0 0
      %424 = vmatpush1.bf16.msra.mxu0 0
      %425 = vmatprep.subr.bf16.mxu0 0
      %426 = vmatpush1.bf16.msra.mxu0 0
      %427 = vmatprep.subr.bf16.mxu0 0
      %428 = vmatpush1.bf16.msra.mxu0 0
      %429 = vmatprep.subr.bf16.mxu0 0
      %430 = vmatpush1.bf16.msra.mxu0 0
      %431 = vmatprep.mubr.bf16.mxu0 0
      %432 = vmatmul.mubr.bf16.gmra.mrb[0].mxu0 %v348
      %v433 = vpop.f32.mrb[0].mxu0
      %v434 = vadd.f32 %v264, %v433
      %v435 = vpop.f32.mrb[0].mxu0
      %v436 = vpop.f32.mrb[0].mxu0
      %v437 = vadd.f32 %v264, %v436
      %v438 = vpop.f32.mrb[0].mxu0
      %439 = vmatprep.mubr.bf16.mxu0 0
      %440 = vmatmul.mubr.bf16.gmra.mrb[0].mxu0 %v351
      %v441 = vpop.f32.mrb[0].mxu0
      %v442 = vadd.f32 %v264, %v441
      %v443 = vpop.f32.mrb[0].mxu0
      %v444 = vpop.f32.mrb[0].mxu0
      %v445 = vadd.f32 %v264, %v444
      %v446 = vpop.f32.mrb[0].mxu0
      %447 = vmatprep.mubr.bf16.mxu0 0
      %448 = vmatmul.mubr.bf16.gmra.mrb[0].mxu0 %v354
      %v449 = vpop.f32.mrb[0].mxu0
      %v450 = vadd.f32 %v264, %v449
      %v451 = vpop.f32.mrb[0].mxu0
      %v452 = vpop.f32.mrb[0].mxu0
      %v453 = vadd.f32 %v264, %v452
      %v454 = vpop.f32.mrb[0].mxu0
      %455 = vmatprep.mubr.bf16.mxu0 0
      %456 = vmatmul.mubr.bf16.gmra.mrb[0].mxu0 %v357
      %v457 = vpop.f32.mrb[0].mxu0
      %v458 = vadd.f32 %v264, %v457
      %v459 = vpop.f32.mrb[0].mxu0
      %v460 = vpop.f32.mrb[0].mxu0
      %v461 = vadd.f32 %v264, %v460
      %v462 = vpop.f32.mrb[0].mxu0
      %463 = vmatprep.mubr.bf16.mxu0 0
      %464 = vmatmul.mubr.bf16.gmra.mrb[0].mxu0 %v360
      %v465 = vpop.f32.mrb[0].mxu0
      %v466 = vadd.f32 %v264, %v465
      %v467 = vpop.f32.mrb[0].mxu0
      %v468 = vpop.f32.mrb[0].mxu0
      %v469 = vadd.f32 %v264, %v468
      %v470 = vpop.f32.mrb[0].mxu0
      %471 = vmatprep.mubr.bf16.mxu0 0
      %472 = vmatmul.mubr.bf16.gmra.mrb[0].mxu0 %v363
      %v473 = vpop.f32.mrb[0].mxu0
      %v474 = vadd.f32 %v264, %v473
      %v475 = vpop.f32.mrb[0].mxu0
      %v476 = vpop.f32.mrb[0].mxu0
      %v477 = vadd.f32 %v264, %v476
      %v478 = vpop.f32.mrb[0].mxu0
      %479 = vmatprep.mubr.bf16.mxu0 0
      %480 = vmatmul.mubr.bf16.gmra.mrb[0].mxu0 %v366
      %v481 = vpop.f32.mrb[0].mxu0
      %v482 = vadd.f32 %v264, %v481
      %v483 = vpop.f32.mrb[0].mxu0
      %v484 = vpop.f32.mrb[0].mxu0
      %v485 = vadd.f32 %v264, %v484
      %v486 = vpop.f32.mrb[0].mxu0
      %487 = vmatprep.mubr.bf16.mxu0 0
      %488 = vmatmul.mubr.bf16.gmra.mrb[0].mxu0 %v369
      %v489 = vpop.f32.mrb[0].mxu0
      %v490 = vadd.f32 %v264, %v489
      %v491 = vpop.f32.mrb[0].mxu0
      %v492 = vpop.f32.mrb[0].mxu0
      %v493 = vadd.f32 %v264, %v492
      %v494 = vpop.f32.mrb[0].mxu0
      %495 = vmatprep.mubr.bf16.mxu0 0
      %496 = vmatmul.mubr.bf16.gmra.mrb[0].mxu0 %v372
      %v497 = vpop.f32.mrb[0].mxu0
      %v498 = vadd.f32 %v264, %v497
      %v499 = vpop.f32.mrb[0].mxu0
      %v500 = vpop.f32.mrb[0].mxu0
      %v501 = vadd.f32 %v264, %v500
      %v502 = vpop.f32.mrb[0].mxu0
      %503 = vmatprep.mubr.bf16.mxu0 0
      %504 = vmatmul.mubr.bf16.gmra.mrb[0].mxu0 %v375
      %v505 = vpop.f32.mrb[0].mxu0
      %v506 = vadd.f32 %v264, %v505
      %v507 = vpop.f32.mrb[0].mxu0
      %v508 = vpop.f32.mrb[0].mxu0
      %v509 = vadd.f32 %v264, %v508
      %v510 = vpop.f32.mrb[0].mxu0
      %511 = vmatprep.mubr.bf16.mxu0 0
      %512 = vmatmul.mubr.bf16.gmra.mrb[0].mxu0 %v378
      %v513 = vpop.f32.mrb[0].mxu0
      %v514 = vadd.f32 %v264, %v513
      %v515 = vpop.f32.mrb[0].mxu0
      %v516 = vpop.f32.mrb[0].mxu0
      %v517 = vadd.f32 %v264, %v516
      %v518 = vpop.f32.mrb[0].mxu0
      %519 = vmatprep.mubr.bf16.mxu0 0
      %520 = vmatmul.mubr.bf16.gmra.mrb[0].mxu0 %v381
      %v521 = vpop.f32.mrb[0].mxu0
      %v522 = vadd.f32 %v264, %v521
      %v523 = vpop.f32.mrb[0].mxu0
      %v524 = vpop.f32.mrb[0].mxu0
      %v525 = vadd.f32 %v264, %v524
      %v526 = vpop.f32.mrb[0].mxu0
      %527 = vmatprep.mubr.bf16.mxu0 0
      %528 = vmatmul.mubr.bf16.gmra.mrb[0].mxu0 %v384
      %v529 = vpop.f32.mrb[0].mxu0
      %v530 = vadd.f32 %v264, %v529
      %v531 = vpop.f32.mrb[0].mxu0
      %v532 = vpop.f32.mrb[0].mxu0
      %v533 = vadd.f32 %v264, %v532
      %v534 = vpop.f32.mrb[0].mxu0
      %535 = vmatprep.mubr.bf16.mxu0 0
      %536 = vmatmul.mubr.bf16.gmra.mrb[0].mxu0 %v387
      %v537 = vpop.f32.mrb[0].mxu0
      %v538 = vadd.f32 %v264, %v537
      %v539 = vpop.f32.mrb[0].mxu0
      %v540 = vpop.f32.mrb[0].mxu0
      %v541 = vadd.f32 %v264, %v540
      %v542 = vpop.f32.mrb[0].mxu0
      %543 = vmatprep.mubr.bf16.mxu0 0
      %544 = vmatmul.mubr.bf16.gmra.mrb[0].mxu0 %v390
      %v545 = vpop.f32.mrb[0].mxu0
      %v546 = vadd.f32 %v264, %v545
      %v547 = vpop.f32.mrb[0].mxu0
      %v548 = vpop.f32.mrb[0].mxu0
      %v549 = vadd.f32 %v264, %v548
      %v550 = vpop.f32.mrb[0].mxu0
      %551 = vmatprep.mubr.bf16.mxu0 0
      %552 = vmatmul.mubr.bf16.gmra.mrb[0].mxu0 %v393
      %v553 = vpop.f32.mrb[0].mxu0
      %v554 = vadd.f32 %v264, %v553
      %v555 = vpop.f32.mrb[0].mxu0
      %v556 = vpop.f32.mrb[0].mxu0
      %v557 = vadd.f32 %v264, %v556
      %v558 = vpop.f32.mrb[0].mxu0
      %559 = vdwg.mxu0
      %vm560 = vcmp.gt.f32.partialorder %v434, 0.0
      %vm561 = vcmp.gt.f32.partialorder %v437, 0.0
      %vm562 = vcmp.gt.f32.partialorder %v442, 0.0
      %vm563 = vcmp.gt.f32.partialorder %v445, 0.0
      %vm564 = vcmp.gt.f32.partialorder %v450, 0.0
      %vm565 = vcmp.gt.f32.partialorder %v453, 0.0
      %vm566 = vcmp.gt.f32.partialorder %v458, 0.0
      %vm567 = vcmp.gt.f32.partialorder %v461, 0.0
      %vm568 = vcmp.gt.f32.partialorder %v466, 0.0
      %vm569 = vcmp.gt.f32.partialorder %v469, 0.0
      %vm570 = vcmp.gt.f32.partialorder %v474, 0.0
      %vm571 = vcmp.gt.f32.partialorder %v477, 0.0
      %vm572 = vcmp.gt.f32.partialorder %v482, 0.0
      %vm573 = vcmp.gt.f32.partialorder %v485, 0.0
      %vm574 = vcmp.gt.f32.partialorder %v490, 0.0
      %vm575 = vcmp.gt.f32.partialorder %v493, 0.0
      %vm576 = vcmp.gt.f32.partialorder %v498, 0.0
      %vm577 = vcmp.gt.f32.partialorder %v501, 0.0
      %vm578 = vcmp.gt.f32.partialorder %v506, 0.0
      %vm579 = vcmp.gt.f32.partialorder %v509, 0.0
      %vm580 = vcmp.gt.f32.partialorder %v514, 0.0
      %vm581 = vcmp.gt.f32.partialorder %v517, 0.0
      %vm582 = vcmp.gt.f32.partialorder %v522, 0.0
      %vm583 = vcmp.gt.f32.partialorder %v525, 0.0
      %vm584 = vcmp.gt.f32.partialorder %v530, 0.0
      %vm585 = vcmp.gt.f32.partialorder %v533, 0.0
      %vm586 = vcmp.gt.f32.partialorder %v538, 0.0
      %vm587 = vcmp.gt.f32.partialorder %v541, 0.0
      %vm588 = vcmp.gt.f32.partialorder %v546, 0.0
      %vm589 = vcmp.gt.f32.partialorder %v549, 0.0
      %vm590 = vcmp.gt.f32.partialorder %v554, 0.0
      %vm591 = vcmp.gt.f32.partialorder %v557, 0.0
      %v592 = vmul.f32 %v434, 0.1
      %v593 = vmul.f32 %v437, 0.1
      %v594 = vmul.f32 %v442, 0.1
      %v595 = vmul.f32 %v445, 0.1
      %v596 = vmul.f32 %v450, 0.1
      %v597 = vmul.f32 %v453, 0.1
      %v598 = vmul.f32 %v458, 0.1
      %v599 = vmul.f32 %v461, 0.1
      %v600 = vmul.f32 %v466, 0.1
      %v601 = vmul.f32 %v469, 0.1
      %v602 = vmul.f32 %v474, 0.1
      %v603 = vmul.f32 %v477, 0.1
      %v604 = vmul.f32 %v482, 0.1
      %v605 = vmul.f32 %v485, 0.1
      %v606 = vmul.f32 %v490, 0.1
      %v607 = vmul.f32 %v493, 0.1
      %v608 = vmul.f32 %v498, 0.1
      %v609 = vmul.f32 %v501, 0.1
      %v610 = vmul.f32 %v506, 0.1
      %v611 = vmul.f32 %v509, 0.1
      %v612 = vmul.f32 %v514, 0.1
      %v613 = vmul.f32 %v517, 0.1
      %v614 = vmul.f32 %v522, 0.1
      %v615 = vmul.f32 %v525, 0.1
      %v616 = vmul.f32 %v530, 0.1
      %v617 = vmul.f32 %v533, 0.1
      %v618 = vmul.f32 %v538, 0.1
      %v619 = vmul.f32 %v541, 0.1
      %v620 = vmul.f32 %v546, 0.1
      %v621 = vmul.f32 %v549, 0.1
      %v622 = vmul.f32 %v554, 0.1
      %v623 = vmul.f32 %v557, 0.1
      %v624 = vsel %vm560, %v434, %v592
      %v625 = vsel %vm561, %v437, %v593
      %v626 = vsel %vm562, %v442, %v594
      %v627 = vsel %vm563, %v445, %v595
      %v628 = vsel %vm564, %v450, %v596
      %v629 = vsel %vm565, %v453, %v597
      %v630 = vsel %vm566, %v458, %v598
      %v631 = vsel %vm567, %v461, %v599
      %v632 = vsel %vm568, %v466, %v600
      %v633 = vsel %vm569, %v469, %v601
      %v634 = vsel %vm570, %v474, %v602
      %v635 = vsel %vm571, %v477, %v603
      %v636 = vsel %vm572, %v482, %v604
      %v637 = vsel %vm573, %v485, %v605
      %v638 = vsel %vm574, %v490, %v606
      %v639 = vsel %vm575, %v493, %v607
      %v640 = vsel %vm576, %v498, %v608
      %v641 = vsel %vm577, %v501, %v609
      %v642 = vsel %vm578, %v506, %v610
      %v643 = vsel %vm579, %v509, %v611
      %v644 = vsel %vm580, %v514, %v612
      %v645 = vsel %vm581, %v517, %v613
      %v646 = vsel %vm582, %v522, %v614
      %v647 = vsel %vm583, %v525, %v615
      %v648 = vsel %vm584, %v530, %v616
      %v649 = vsel %vm585, %v533, %v617
      %v650 = vsel %vm586, %v538, %v618
      %v651 = vsel %vm587, %v541, %v619
      %v652 = vsel %vm588, %v546, %v620
      %v653 = vsel %vm589, %v549, %v621
      %v654 = vsel %vm590, %v554, %v622
      %v655 = vsel %vm591, %v557, %v623
      %v656 = vpack.c.bf16 %v625, %v624
      %v657 = vpack.c.bf16 %v627, %v626
      %v658 = vpack.c.bf16 %v629, %v628
      %v659 = vpack.c.bf16 %v631, %v630
      %v660 = vpack.c.bf16 %v633, %v632
      %v661 = vpack.c.bf16 %v635, %v634
      %v662 = vpack.c.bf16 %v637, %v636
      %v663 = vpack.c.bf16 %v639, %v638
      %v664 = vpack.c.bf16 %v641, %v640
      %v665 = vpack.c.bf16 %v643, %v642
      %v666 = vpack.c.bf16 %v645, %v644
      %v667 = vpack.c.bf16 %v647, %v646
      %v668 = vpack.c.bf16 %v649, %v648
      %v669 = vpack.c.bf16 %v651, %v650
      %v670 = vpack.c.bf16 %v653, %v652
      %v671 = vpack.c.bf16 %v655, %v654
      %v688 = vunpack.c.l.b16 %v656
      %v689 = vunpack.c.h.b16 %v656
      %v690 = vunpack.c.l.b16 %v657
      %v691 = vunpack.c.h.b16 %v657
      %v692 = vunpack.c.l.b16 %v658
      %v693 = vunpack.c.h.b16 %v658
      %v694 = vunpack.c.l.b16 %v659
      %v695 = vunpack.c.h.b16 %v659
      %v696 = vunpack.c.l.b16 %v660
      %v697 = vunpack.c.h.b16 %v660
      %v698 = vunpack.c.l.b16 %v661
      %v699 = vunpack.c.h.b16 %v661
      %v700 = vunpack.c.l.b16 %v662
      %v701 = vunpack.c.h.b16 %v662
      %v702 = vunpack.c.l.b16 %v663
      %v703 = vunpack.c.h.b16 %v663
      %v704 = vunpack.c.l.b16 %v664
      %v705 = vunpack.c.h.b16 %v664
      %v706 = vunpack.c.l.b16 %v665
      %v707 = vunpack.c.h.b16 %v665
      %v708 = vunpack.c.l.b16 %v666
      %v709 = vunpack.c.h.b16 %v666
      %v710 = vunpack.c.l.b16 %v667
      %v711 = vunpack.c.h.b16 %v667
      %v712 = vunpack.c.l.b16 %v668
      %v713 = vunpack.c.h.b16 %v668
      %v714 = vunpack.c.l.b16 %v669
      %v715 = vunpack.c.h.b16 %v669
      %v716 = vunpack.c.l.b16 %v670
      %v717 = vunpack.c.h.b16 %v670
      %v718 = vunpack.c.l.b16 %v671
      %v719 = vunpack.c.h.b16 %v671
      %v720 = vpack.c.b16 %v688, %v688
      %v721 = vpack.c.b16 %v689, %v689
      %v722 = vpack.c.b16 %v690, %v690
      %v723 = vpack.c.b16 %v691, %v691
      %v724 = vpack.c.b16 %v692, %v692
      %v725 = vpack.c.b16 %v693, %v693
      %v726 = vpack.c.b16 %v694, %v694
      %v727 = vpack.c.b16 %v695, %v695
      %v728 = vpack.c.b16 %v696, %v696
      %v729 = vpack.c.b16 %v697, %v697
      %v730 = vpack.c.b16 %v698, %v698
      %v731 = vpack.c.b16 %v699, %v699
      %v732 = vpack.c.b16 %v700, %v700
      %v733 = vpack.c.b16 %v701, %v701
      %v734 = vpack.c.b16 %v702, %v702
      %v735 = vpack.c.b16 %v703, %v703
      %v736 = vpack.c.b16 %v704, %v704
      %v737 = vpack.c.b16 %v705, %v705
      %v738 = vpack.c.b16 %v706, %v706
      %v739 = vpack.c.b16 %v707, %v707
      %v740 = vpack.c.b16 %v708, %v708
      %v741 = vpack.c.b16 %v709, %v709
      %v742 = vpack.c.b16 %v710, %v710
      %v743 = vpack.c.b16 %v711, %v711
      %v744 = vpack.c.b16 %v712, %v712
      %v745 = vpack.c.b16 %v713, %v713
      %v746 = vpack.c.b16 %v714, %v714
      %v747 = vpack.c.b16 %v715, %v715
      %v748 = vpack.c.b16 %v716, %v716
      %v749 = vpack.c.b16 %v717, %v717
      %v750 = vpack.c.b16 %v718, %v718
      %v751 = vpack.c.b16 %v719, %v719
      %784 = vst [vmem:[%s223] sm:$0xf] %v720
      %785 = vst [vmem:[%s223 + $0x4] sm:$0xf] %v721
      %786 = vst [vmem:[%s223 + $0x8] sm:$0xf] %v722
      %787 = vst [vmem:[%s223 + $0xc] sm:$0xf] %v723
      %788 = vst [vmem:[%s223 + $0x10] sm:$0xf] %v724
      %789 = vst [vmem:[%s223 + $0x14] sm:$0xf] %v725
      %790 = vst [vmem:[%s223 + $0x18] sm:$0xf] %v726
      %791 = vst [vmem:[%s223 + $0x1c] sm:$0xf] %v727
      %792 = vst [vmem:[%s223 + $0x20] sm:$0xf] %v728
      %793 = vst [vmem:[%s223 + $0x24] sm:$0xf] %v729
      %794 = vst [vmem:[%s223 + $0x28] sm:$0xf] %v730
      %795 = vst [vmem:[%s223 + $0x2c] sm:$0xf] %v731
      %796 = vst [vmem:[%s223 + $0x30] sm:$0xf] %v732
      %797 = vst [vmem:[%s223 + $0x34] sm:$0xf] %v733
      %798 = vst [vmem:[%s223 + $0x38] sm:$0xf] %v734
      %799 = vst [vmem:[%s223 + $0x3c] sm:$0xf] %v735
      %800 = vst [vmem:[%s223 + $0x40] sm:$0xf] %v736
      %801 = vst [vmem:[%s223 + $0x44] sm:$0xf] %v737
      %802 = vst [vmem:[%s223 + $0x48] sm:$0xf] %v738
      %803 = vst [vmem:[%s223 + $0x4c] sm:$0xf] %v739
      %804 = vst [vmem:[%s223 + $0x50] sm:$0xf] %v740
      %805 = vst [vmem:[%s223 + $0x54] sm:$0xf] %v741
      %806 = vst [vmem:[%s223 + $0x58] sm:$0xf] %v742
      %807 = vst [vmem:[%s223 + $0x5c] sm:$0xf] %v743
      %808 = vst [vmem:[%s223 + $0x60] sm:$0xf] %v744
      %809 = vst [vmem:[%s223 + $0x64] sm:$0xf] %v745
      %810 = vst [vmem:[%s223 + $0x68] sm:$0xf] %v746
      %811 = vst [vmem:[%s223 + $0x6c] sm:$0xf] %v747
      %812 = vst [vmem:[%s223 + $0x70] sm:$0xf] %v748
      %813 = vst [vmem:[%s223 + $0x74] sm:$0xf] %v749
      %814 = vst [vmem:[%s223 + $0x78] sm:$0xf] %v750
      %815 = vst [vmem:[%s223 + $0x7c] sm:$0xf] %v751
      %s816 = smul.u32 32, %s19
      %p817 = scmp.lt.s32.totalorder %s816, 63
      %s818 = scalar_select %p817, %s816, 63
      %p819 = scmp.lt.s32.totalorder %s18, 0
      %s820 = scalar_select %p819, %s18, 0
      %s821 = sadd.s32 %s820, %s818
      %s822 = smul.addr %s821, 4
      %s823 = scalar_lea.vmem %s3, %s822
      // Predicated region
      $region33: #{_forward.1} parent=31 // pred_check
        %p824 = pneg %p124
      $region34: #{_forward.1} parent=31 // pred_check_branch
        %826 = sbr.rel (%p824) target = $region36
      $region35: #{_forward.1} parent=31 // pred_region
        %s827 = smul.u32 32, %s19
      $region36: #{_forward.1} parent=31 // pred_fallthru
        _
    $region32: #{_forward.1} parent=5 // pred_fallthru
      _
    %p828 = scmp.le.s32.totalorder 2, %s9
    // Predicated region
    $region37: #{_forward.1} parent=5 // pred_check
      %p829 = pneg %p828
    $region38: #{_forward.1} parent=5 // pred_check_branch
      %831 = sbr.rel (%p829) target = $region40
    $region39: #{_forward.1} parent=5 // pred_region
      %s832 = ssub.s32 %s9, 2
      // Predicated region
      $region41: #{_forward.1} parent=39 // pred_check
        %p833 = pneg %p130
      $region42: #{_forward.1} parent=39 // pred_check_branch
        %835 = sbr.rel (%p833) target = $region44
      $region43: #{_forward.1} parent=39 // pred_region
        %s836 = smul.u32 32, %s21
        %p837 = scmp.lt.s32.totalorder %s836, 63
        %s838 = scalar_select %p837, %s836, 63
        %p839 = scmp.lt.s32.totalorder %s20, 0
        %s840 = scalar_select %p839, %s20, 0
        %s841 = sadd.s32 %s840, %s838
        %s842 = smul.addr %s841, 4
        %s843 = scalar_lea.vmem %s3, %s842
      $region44: #{_forward.1} parent=39 // pred_fallthru
        _
    $region40: #{_forward.1} parent=5 // pred_fallthru
      _
  $region6: #{_forward.1} parent=0 // loop_footer
    %s13 = sadd.s32 1, %s9
  $region7: #{_forward.1} parent=0 // loop_footer_branch
    %8 = sbr.rel target = $region3
  $region8: #{_forward.1} parent=0 // loop_exit
    _

</llo_original>
